<compile_context>
chip_gen: v7x
topology: tpu7x:2x2x1
jax: 0.10.0
libtpu: 0.0.40
codegen_flags: <defaults>
</compile_context>

<pallas_src>
import functools

import jax
import jax.numpy as jnp
from jax import lax
from jax.experimental import pallas as pl
from jax.experimental.pallas import tpu as pltpu

HIDDEN_SIZE = 32
INPUT_SIZE = 1
OUTPUT_SIZE = 1


def lstm_fc_kernel(x_ref, wih_ref, whh_ref, b_ref, wfc_ref, bfc_ref, out_ref,
                   h_scr, c_scr, *, hidden, n_chains):
    # x_ref: (tb, tc) lane-dense batch/time tile; weights fully VMEM-resident.
    # h_scr/c_scr: (tb, H) persistent VMEM scratch carrying the recurrent state
    # across time-chunk grid steps.
    H = hidden
    t_blk = pl.program_id(1)
    n_t_blk = pl.num_programs(1)

    @pl.when(t_blk == 0)
    def _init():
        h_scr[...] = jnp.zeros_like(h_scr)
        c_scr[...] = jnp.zeros_like(c_scr)

    wih = wih_ref[...]                    # (1, 4H)  (input_size == 1)
    whh = whh_ref[...]                    # (H, 4H)
    b = b_ref[...]                        # (1, 4H)

    # Hoisted per-lane constants for the single-sigmoid activation pass:
    #   i/f/o lanes: act = sigmoid(g)
    #   g lanes:     act = 2*sigmoid(2*g) - 1 == tanh(g)
    lane = lax.broadcasted_iota(jnp.int32, (1, 4 * H), 1)
    is_g = (lane >= 2 * H) & (lane < 3 * H)
    pre = jnp.where(is_g, jnp.float32(2.0), jnp.float32(1.0))     # (1, 4H)
    post_mul = pre
    post_add = jnp.where(is_g, jnp.float32(-1.0), jnp.float32(0.0))

    TB = h_scr.shape[0]
    TC = x_ref.shape[1]
    cs = TB // n_chains

    # Load carried state once per chunk; keep the recurrence in vregs.
    hs = [h_scr[k * cs:(k + 1) * cs, :] for k in range(n_chains)]
    ccs = [c_scr[k * cs:(k + 1) * cs, :] for k in range(n_chains)]

    # Static unroll over the time chunk; independent chains interleave so the MXU
    # dot of one chain overlaps the EUP/VPU tail of the other.
    for t in range(TC):
        for k in range(n_chains):
            h, c = hs[k], ccs[k]
            xt = x_ref[k * cs:(k + 1) * cs, t:t + 1]               # (cs, 1)
            # Input projection folded into the step (I == 1 -> VPU broadcast-mul).
            gates = xt * wih + b + jnp.dot(h, whh,
                                           preferred_element_type=jnp.float32)
            # One full-width EUP launch for all four gates.
            act = jax.nn.sigmoid(gates * pre) * post_mul + post_add
            i_g = act[:, 0:H]
            f_g = act[:, H:2 * H]
            g_g = act[:, 2 * H:3 * H]
            o_g = act[:, 3 * H:4 * H]
            c_new = f_g * c + i_g * g_g
            h_new = o_g * jnp.tanh(c_new)
            hs[k], ccs[k] = h_new, c_new

    # Write the carried state back for the next time chunk.
    for k in range(n_chains):
        h_scr[k * cs:(k + 1) * cs, :] = hs[k]
        c_scr[k * cs:(k + 1) * cs, :] = ccs[k]

    @pl.when(t_blk == n_t_blk - 1)
    def _finalize():
        # Final FC has N == 1: VPU multiply + lane reduce; store lane-dense row.
        h_last = h_scr[...]                                        # (TB, H)
        y = jnp.sum(h_last * wfc_ref[...], axis=-1, keepdims=True) + bfc_ref[...]
        out_ref[...] = y.reshape(1, TB)


def _pick_batch_tile(B):
    # Largest batch tile satisfying the sublane rule (tb % 8 == 0 or tb == B)
    # that still leaves >= 2 grid points when possible (v7x megacore).
    # Capped at 128 to keep per-step h/c/gate live state within the vreg file.
    if B % 8 != 0:
        return B
    for tb in (128, 64, 32, 16, 8):
        if B % tb == 0 and B // tb >= 2:
            return tb
    return B


def _pick_time_chunk(T):
    # Lane rule for the (tb, tc) x block: tc % 128 == 0 or tc == T.
    if T > 128 and T % 128 == 0:
        return 128
    return T


def fedformer_forward(x, params, *, batch_tile=None, time_chunk=None):
    B, T, I = x.shape
    assert I == INPUT_SIZE
    H = HIDDEN_SIZE
    tb = batch_tile or _pick_batch_tile(B)
    tc = time_chunk or _pick_time_chunk(T)
    assert B % tb == 0, (B, tb)
    assert T % tc == 0, (T, tc)

    n_chains = 2 if (tb % 16 == 0) else 1

    # Layout plumbing only: squeeze I == 1 so x is lane-dense (batch in sublanes,
    # time in lanes).
    x2d = x[:, :, 0]                                               # (B, T)

    kernel = functools.partial(lstm_fc_kernel, hidden=H, n_chains=n_chains)

    out = pl.pallas_call(
        kernel,
        out_shape=jax.ShapeDtypeStruct((B // tb, tb), jnp.float32),
        grid_spec=pltpu.PrefetchScalarGridSpec(
            num_scalar_prefetch=0,
            grid=(B // tb, T // tc),
            in_specs=[
                pl.BlockSpec((tb, tc), lambda i, j: (i, j)),           # x (B, T)
                pl.BlockSpec((INPUT_SIZE, 4 * H), lambda i, j: (0, 0)),  # W_ih^T
                pl.BlockSpec((H, 4 * H), lambda i, j: (0, 0)),           # W_hh^T
                pl.BlockSpec((1, 4 * H), lambda i, j: (0, 0)),           # b_ih+b_hh
                pl.BlockSpec((1, H), lambda i, j: (0, 0)),               # fc.weight
                pl.BlockSpec((1, 1), lambda i, j: (0, 0)),               # fc.bias
            ],
            out_specs=pl.BlockSpec((1, tb), lambda i, j: (i, 0)),    # lane-dense
            scratch_shapes=[pltpu.VMEM((tb, H), jnp.float32),        # h carry
                            pltpu.VMEM((tb, H), jnp.float32)],       # c carry
        ),
        compiler_params=pltpu.CompilerParams(
            dimension_semantics=("parallel", "arbitrary"),
            # Post layout-fix footprint is < 1 MiB; 32 MiB is explicit and safe on
            # v5e (16 MiB scoped default), v6e and v7x (64 MiB physical).
            vmem_limit_bytes=32 * 1024 * 1024,
        ),
    )(x2d, params["wih_t"], params["whh_t"], params["b"],
      params["wfc"], params["bfc"])

    return out.reshape(B, OUTPUT_SIZE)


def init_params(key, input_size=INPUT_SIZE, hidden_size=HIDDEN_SIZE,
                output_size=OUTPUT_SIZE):
    # Deterministic init mirroring PyTorch's uniform(-1/sqrt(H), 1/sqrt(H)).
    k = 1.0 / jnp.sqrt(jnp.float32(hidden_size))
    ks = jax.random.split(key, 6)
    u = lambda kk, shape: jax.random.uniform(kk, shape, jnp.float32, -k, k)
    w_ih = u(ks[0], (4 * hidden_size, input_size))   # PyTorch weight_ih_l0
    w_hh = u(ks[1], (4 * hidden_size, hidden_size))  # PyTorch weight_hh_l0
    b_ih = u(ks[2], (4 * hidden_size,))
    b_hh = u(ks[3], (4 * hidden_size,))
    w_fc = u(ks[4], (output_size, hidden_size))      # PyTorch fc.weight
    b_fc = u(ks[5], (output_size,))
    return {
        "wih_t": w_ih.T,                             # (I, 4H)
        "whh_t": w_hh.T,                             # (H, 4H)
        "b": (b_ih + b_hh)[None, :],                 # (1, 4H)
        "wfc": w_fc,                                 # (1, H)
        "bfc": b_fc[None, :],                        # (1, 1)
    }


def reference_forward(x, params):
    # Pure-JAX reference of the PyTorch forward for validation.
    B, T, _ = x.shape
    H = HIDDEN_SIZE
    h = jnp.zeros((B, H), jnp.float32)
    c = jnp.zeros((B, H), jnp.float32)
    xproj = jnp.einsum("bti,ig->btg", x, params["wih_t"]) + params["b"]
    for t in range(T):
        gates = xproj[:, t, :] + h @ params["whh_t"]
        i_g = jax.nn.sigmoid(gates[:, 0:H])
        f_g = jax.nn.sigmoid(gates[:, H:2 * H])
        g_g = jnp.tanh(gates[:, 2 * H:3 * H])
        o_g = jax.nn.sigmoid(gates[:, 3 * H:4 * H])
        c = f_g * c + i_g * g_g
        h = o_g * jnp.tanh(c)
    return h @ params["wfc"].T + params["bfc"]


if __name__ == "__main__":
    key = jax.random.PRNGKey(0)
    k_x, k_p = jax.random.split(key)
    B, T = 2, 8
    x = jax.random.normal(k_x, (B, T, INPUT_SIZE), jnp.float32)
    params = init_params(k_p)

    out = fedformer_forward(x, params)
    out = jax.block_until_ready(out)

    ref = reference_forward(x, params)
    assert out.shape == (B, OUTPUT_SIZE)
    assert jnp.allclose(out, ref, rtol=1e-5, atol=1e-5), (out, ref)
    print("KERNEL_OK")
</pallas_src>

<mosaic_0001>
module attributes {stable_mosaic.version = 11 : i64} {
  func.func @lstm_fc_kernel(%arg0: i32, %arg1: i32, %arg2: memref<2x8xf32, #tpu.memory_space<vmem>>, %arg3: memref<1x128xf32, #tpu.memory_space<vmem>>, %arg4: memref<32x128xf32, #tpu.memory_space<vmem>>, %arg5: memref<1x128xf32, #tpu.memory_space<vmem>>, %arg6: memref<1x32xf32, #tpu.memory_space<vmem>>, %arg7: memref<1x1xf32, #tpu.memory_space<vmem>>, %arg8: memref<1x2xf32, #tpu.memory_space<vmem>>, %arg9: memref<2x32xf32, #tpu.memory_space<vmem>>, %arg10: memref<2x32xf32, #tpu.memory_space<vmem>>) attributes {dimension_semantics = [#tpu.dimension_semantics<parallel>, #tpu.dimension_semantics<arbitrary>], iteration_bounds = array<i64: 1, 1>, scalar_prefetch = 0 : i64, scratch_operands = 2 : i64, tpu.core_type = #tpu.core_type<tc>, window_params = [{transform_indices = @transform_0, window_bounds = array<i64: 2, 8>}, {pipeline_mode = #tpu.pipeline_mode<synchronous>, transform_indices = @transform_1, window_bounds = array<i64: 1, 128>}, {pipeline_mode = #tpu.pipeline_mode<synchronous>, transform_indices = @transform_2, window_bounds = array<i64: 32, 128>}, {pipeline_mode = #tpu.pipeline_mode<synchronous>, transform_indices = @transform_3, window_bounds = array<i64: 1, 128>}, {pipeline_mode = #tpu.pipeline_mode<synchronous>, transform_indices = @transform_4, window_bounds = array<i64: 1, 32>}, {pipeline_mode = #tpu.pipeline_mode<synchronous>, transform_indices = @transform_5, window_bounds = array<i64: 1, 1>}, {transform_indices = @transform_6, window_bounds = array<i64: 1, 2>}]} {
    %c0_i32 = arith.constant 0 : i32
    %0 = arith.cmpi eq, %arg1, %c0_i32 : i32
    %1 = arith.extui %0 : i1 to i32
    %c0_i32_0 = arith.constant 0 : i32
    %2 = arith.cmpi ne, %1, %c0_i32_0 : i32
    scf.if %2 {
      %cst_44 = arith.constant 0.000000e+00 : f32
      %249 = vector.broadcast %cst_44 : f32 to vector<2x32xf32>
      %c0_45 = arith.constant 0 : index
      %c0_46 = arith.constant 0 : index
      %250 = vector.load %arg9[%c0_45, %c0_46] : memref<2x32xf32, #tpu.memory_space<vmem>>, vector<2x32xf32>
      tpu.vector_store %arg9[%c0_45, %c0_46], %249 {strides = array<i32>} : memref<2x32xf32, #tpu.memory_space<vmem>>, vector<2x32xf32>,
      %cst_47 = arith.constant 0.000000e+00 : f32
      %251 = vector.broadcast %cst_47 : f32 to vector<2x32xf32>
      %c0_48 = arith.constant 0 : index
      %c0_49 = arith.constant 0 : index
      %252 = vector.load %arg10[%c0_48, %c0_49] : memref<2x32xf32, #tpu.memory_space<vmem>>, vector<2x32xf32>
      tpu.vector_store %arg10[%c0_48, %c0_49], %251 {strides = array<i32>} : memref<2x32xf32, #tpu.memory_space<vmem>>, vector<2x32xf32>,
    } else {
    }
    %c0 = arith.constant 0 : index
    %c0_1 = arith.constant 0 : index
    %3 = vector.load %arg3[%c0, %c0_1] : memref<1x128xf32, #tpu.memory_space<vmem>>, vector<1x128xf32>
    %c0_2 = arith.constant 0 : index
    %c0_3 = arith.constant 0 : index
    %4 = vector.load %arg4[%c0_2, %c0_3] : memref<32x128xf32, #tpu.memory_space<vmem>>, vector<32x128xf32>
    %c0_4 = arith.constant 0 : index
    %c0_5 = arith.constant 0 : index
    %5 = vector.load %arg5[%c0_4, %c0_5] : memref<1x128xf32, #tpu.memory_space<vmem>>, vector<1x128xf32>
    %6 = tpu.iota {dimensions = array<i32: 1>} : vector<1x128xi32>
    %c64_i32 = arith.constant 64 : i32
    %7 = vector.broadcast %c64_i32 : i32 to vector<1x128xi32>
    %8 = arith.cmpi sge, %6, %7 : vector<1x128xi32>
    %c96_i32 = arith.constant 96 : i32
    %9 = vector.broadcast %c96_i32 : i32 to vector<1x128xi32>
    %10 = arith.cmpi slt, %6, %9 : vector<1x128xi32>
    %11 = arith.andi %8, %10 : vector<1x128xi1>
    %cst = arith.constant 2.000000e+00 : f32
    %cst_6 = arith.constant 1.000000e+00 : f32
    %12 = vector.broadcast %cst : f32 to vector<1x128xf32>
    %13 = vector.broadcast %cst_6 : f32 to vector<1x128xf32>
    %14 = arith.select %11, %12, %13 : vector<1x128xi1>, vector<1x128xf32>
    %cst_7 = arith.constant -1.000000e+00 : f32
    %cst_8 = arith.constant 0.000000e+00 : f32
    %15 = vector.broadcast %cst_7 : f32 to vector<1x128xf32>
    %16 = vector.broadcast %cst_8 : f32 to vector<1x128xf32>
    %17 = arith.select %11, %15, %16 : vector<1x128xi1>, vector<1x128xf32>
    %c0_9 = arith.constant 0 : index
    %c0_10 = arith.constant 0 : index
    %18 = vector.load %arg9[%c0_9, %c0_10] : memref<2x32xf32, #tpu.memory_space<vmem>>, vector<2x32xf32>
    %c0_11 = arith.constant 0 : index
    %c0_12 = arith.constant 0 : index
    %19 = vector.load %arg10[%c0_11, %c0_12] : memref<2x32xf32, #tpu.memory_space<vmem>>, vector<2x32xf32>
    %c0_13 = arith.constant 0 : index
    %c0_14 = arith.constant 0 : index
    %20 = vector.load %arg2[%c0_13, %c0_14] : memref<2x8xf32, #tpu.memory_space<vmem>>, vector<2x1xf32>
    %21 = vector.broadcast %20 : vector<2x1xf32> to vector<2x128xf32>
    %22 = vector.broadcast %3 : vector<1x128xf32> to vector<2x128xf32>
    %23 = arith.mulf %21, %22 : vector<2x128xf32>
    %24 = vector.broadcast %5 : vector<1x128xf32> to vector<2x128xf32>
    %25 = arith.addf %23, %24 : vector<2x128xf32>
    %cst_15 = arith.constant dense<0.000000e+00> : vector<2x128xf32>
    %26 = tpu.matmul %18, %4, %cst_15 {dimension_numbers = #tpu.dot_dimension_numbers<[1], [0], [0], [1], [0, 0, 1, 1], [], []>} : vector<2x32xf32>, vector<32x128xf32>, vector<2x128xf32> -> vector<2x128xf32>
    %27 = arith.addf %25, %26 : vector<2x128xf32>
    %28 = vector.broadcast %14 : vector<1x128xf32> to vector<2x128xf32>
    %29 = arith.mulf %27, %28 : vector<2x128xf32>
    %30 = arith.negf %29 : vector<2x128xf32>
    %31 = math.exp %30 : vector<2x128xf32>
    %cst_16 = arith.constant 1.000000e+00 : f32
    %32 = vector.broadcast %cst_16 : f32 to vector<2x128xf32>
    %33 = arith.addf %32, %31 : vector<2x128xf32>
    %34 = arith.divf %32, %33 : vector<2x128xf32>
    %35 = vector.broadcast %14 : vector<1x128xf32> to vector<2x128xf32>
    %36 = arith.mulf %34, %35 : vector<2x128xf32>
    %37 = vector.broadcast %17 : vector<1x128xf32> to vector<2x128xf32>
    %38 = arith.addf %36, %37 : vector<2x128xf32>
    %39 = vector.extract_strided_slice %38 {offsets = [0, 0], sizes = [2, 32], strides = [1, 1]} : vector<2x128xf32> to vector<2x32xf32>
    %40 = vector.extract_strided_slice %38 {offsets = [0, 32], sizes = [2, 32], strides = [1, 1]} : vector<2x128xf32> to vector<2x32xf32>
    %41 = vector.extract_strided_slice %38 {offsets = [0, 64], sizes = [2, 32], strides = [1, 1]} : vector<2x128xf32> to vector<2x32xf32>
    %42 = vector.extract_strided_slice %38 {offsets = [0, 96], sizes = [2, 32], strides = [1, 1]} : vector<2x128xf32> to vector<2x32xf32>
    %43 = arith.mulf %40, %19 : vector<2x32xf32>
    %44 = arith.mulf %39, %41 : vector<2x32xf32>
    %45 = arith.addf %43, %44 : vector<2x32xf32>
    %46 = math.tanh %45 : vector<2x32xf32>
    %47 = arith.mulf %42, %46 : vector<2x32xf32>
    %c0_17 = arith.constant 0 : index
    %c1 = arith.constant 1 : index
    %48 = vector.load %arg2[%c0_17, %c1] : memref<2x8xf32, #tpu.memory_space<vmem>>, vector<2x1xf32>
    %49 = vector.broadcast %48 : vector<2x1xf32> to vector<2x128xf32>
    %50 = vector.broadcast %3 : vector<1x128xf32> to vector<2x128xf32>
    %51 = arith.mulf %49, %50 : vector<2x128xf32>
    %52 = vector.broadcast %5 : vector<1x128xf32> to vector<2x128xf32>
    %53 = arith.addf %51, %52 : vector<2x128xf32>
    %cst_18 = arith.constant dense<0.000000e+00> : vector<2x128xf32>
    %54 = tpu.matmul %47, %4, %cst_18 {dimension_numbers = #tpu.dot_dimension_numbers<[1], [0], [0], [1], [0, 0, 1, 1], [], []>} : vector<2x32xf32>, vector<32x128xf32>, vector<2x128xf32> -> vector<2x128xf32>
    %55 = arith.addf %53, %54 : vector<2x128xf32>
    %56 = vector.broadcast %14 : vector<1x128xf32> to vector<2x128xf32>
    %57 = arith.mulf %55, %56 : vector<2x128xf32>
    %58 = arith.negf %57 : vector<2x128xf32>
    %59 = math.exp %58 : vector<2x128xf32>
    %cst_19 = arith.constant 1.000000e+00 : f32
    %60 = vector.broadcast %cst_19 : f32 to vector<2x128xf32>
    %61 = arith.addf %60, %59 : vector<2x128xf32>
    %62 = arith.divf %60, %61 : vector<2x128xf32>
    %63 = vector.broadcast %14 : vector<1x128xf32> to vector<2x128xf32>
    %64 = arith.mulf %62, %63 : vector<2x128xf32>
    %65 = vector.broadcast %17 : vector<1x128xf32> to vector<2x128xf32>
    %66 = arith.addf %64, %65 : vector<2x128xf32>
    %67 = vector.extract_strided_slice %66 {offsets = [0, 0], sizes = [2, 32], strides = [1, 1]} : vector<2x128xf32> to vector<2x32xf32>
    %68 = vector.extract_strided_slice %66 {offsets = [0, 32], sizes = [2, 32], strides = [1, 1]} : vector<2x128xf32> to vector<2x32xf32>
    %69 = vector.extract_strided_slice %66 {offsets = [0, 64], sizes = [2, 32], strides = [1, 1]} : vector<2x128xf32> to vector<2x32xf32>
    %70 = vector.extract_strided_slice %66 {offsets = [0, 96], sizes = [2, 32], strides = [1, 1]} : vector<2x128xf32> to vector<2x32xf32>
    %71 = arith.mulf %68, %45 : vector<2x32xf32>
    %72 = arith.mulf %67, %69 : vector<2x32xf32>
    %73 = arith.addf %71, %72 : vector<2x32xf32>
    %74 = math.tanh %73 : vector<2x32xf32>
    %75 = arith.mulf %70, %74 : vector<2x32xf32>
    %c0_20 = arith.constant 0 : index
    %c2 = arith.constant 2 : index
    %76 = vector.load %arg2[%c0_20, %c2] : memref<2x8xf32, #tpu.memory_space<vmem>>, vector<2x1xf32>
    %77 = vector.broadcast %76 : vector<2x1xf32> to vector<2x128xf32>
    %78 = vector.broadcast %3 : vector<1x128xf32> to vector<2x128xf32>
    %79 = arith.mulf %77, %78 : vector<2x128xf32>
    %80 = vector.broadcast %5 : vector<1x128xf32> to vector<2x128xf32>
    %81 = arith.addf %79, %80 : vector<2x128xf32>
    %cst_21 = arith.constant dense<0.000000e+00> : vector<2x128xf32>
    %82 = tpu.matmul %75, %4, %cst_21 {dimension_numbers = #tpu.dot_dimension_numbers<[1], [0], [0], [1], [0, 0, 1, 1], [], []>} : vector<2x32xf32>, vector<32x128xf32>, vector<2x128xf32> -> vector<2x128xf32>
    %83 = arith.addf %81, %82 : vector<2x128xf32>
    %84 = vector.broadcast %14 : vector<1x128xf32> to vector<2x128xf32>
    %85 = arith.mulf %83, %84 : vector<2x128xf32>
    %86 = arith.negf %85 : vector<2x128xf32>
    %87 = math.exp %86 : vector<2x128xf32>
    %cst_22 = arith.constant 1.000000e+00 : f32
    %88 = vector.broadcast %cst_22 : f32 to vector<2x128xf32>
    %89 = arith.addf %88, %87 : vector<2x128xf32>
    %90 = arith.divf %88, %89 : vector<2x128xf32>
    %91 = vector.broadcast %14 : vector<1x128xf32> to vector<2x128xf32>
    %92 = arith.mulf %90, %91 : vector<2x128xf32>
    %93 = vector.broadcast %17 : vector<1x128xf32> to vector<2x128xf32>
    %94 = arith.addf %92, %93 : vector<2x128xf32>
    %95 = vector.extract_strided_slice %94 {offsets = [0, 0], sizes = [2, 32], strides = [1, 1]} : vector<2x128xf32> to vector<2x32xf32>
    %96 = vector.extract_strided_slice %94 {offsets = [0, 32], sizes = [2, 32], strides = [1, 1]} : vector<2x128xf32> to vector<2x32xf32>
    %97 = vector.extract_strided_slice %94 {offsets = [0, 64], sizes = [2, 32], strides = [1, 1]} : vector<2x128xf32> to vector<2x32xf32>
    %98 = vector.extract_strided_slice %94 {offsets = [0, 96], sizes = [2, 32], strides = [1, 1]} : vector<2x128xf32> to vector<2x32xf32>
    %99 = arith.mulf %96, %73 : vector<2x32xf32>
    %100 = arith.mulf %95, %97 : vector<2x32xf32>
    %101 = arith.addf %99, %100 : vector<2x32xf32>
    %102 = math.tanh %101 : vector<2x32xf32>
    %103 = arith.mulf %98, %102 : vector<2x32xf32>
    %c0_23 = arith.constant 0 : index
    %c3 = arith.constant 3 : index
    %104 = vector.load %arg2[%c0_23, %c3] : memref<2x8xf32, #tpu.memory_space<vmem>>, vector<2x1xf32>
    %105 = vector.broadcast %104 : vector<2x1xf32> to vector<2x128xf32>
    %106 = vector.broadcast %3 : vector<1x128xf32> to vector<2x128xf32>
    %107 = arith.mulf %105, %106 : vector<2x128xf32>
    %108 = vector.broadcast %5 : vector<1x128xf32> to vector<2x128xf32>
    %109 = arith.addf %107, %108 : vector<2x128xf32>
    %cst_24 = arith.constant dense<0.000000e+00> : vector<2x128xf32>
    %110 = tpu.matmul %103, %4, %cst_24 {dimension_numbers = #tpu.dot_dimension_numbers<[1], [0], [0], [1], [0, 0, 1, 1], [], []>} : vector<2x32xf32>, vector<32x128xf32>, vector<2x128xf32> -> vector<2x128xf32>
    %111 = arith.addf %109, %110 : vector<2x128xf32>
    %112 = vector.broadcast %14 : vector<1x128xf32> to vector<2x128xf32>
    %113 = arith.mulf %111, %112 : vector<2x128xf32>
    %114 = arith.negf %113 : vector<2x128xf32>
    %115 = math.exp %114 : vector<2x128xf32>
    %cst_25 = arith.constant 1.000000e+00 : f32
    %116 = vector.broadcast %cst_25 : f32 to vector<2x128xf32>
    %117 = arith.addf %116, %115 : vector<2x128xf32>
    %118 = arith.divf %116, %117 : vector<2x128xf32>
    %119 = vector.broadcast %14 : vector<1x128xf32> to vector<2x128xf32>
    %120 = arith.mulf %118, %119 : vector<2x128xf32>
    %121 = vector.broadcast %17 : vector<1x128xf32> to vector<2x128xf32>
    %122 = arith.addf %120, %121 : vector<2x128xf32>
    %123 = vector.extract_strided_slice %122 {offsets = [0, 0], sizes = [2, 32], strides = [1, 1]} : vector<2x128xf32> to vector<2x32xf32>
    %124 = vector.extract_strided_slice %122 {offsets = [0, 32], sizes = [2, 32], strides = [1, 1]} : vector<2x128xf32> to vector<2x32xf32>
    %125 = vector.extract_strided_slice %122 {offsets = [0, 64], sizes = [2, 32], strides = [1, 1]} : vector<2x128xf32> to vector<2x32xf32>
    %126 = vector.extract_strided_slice %122 {offsets = [0, 96], sizes = [2, 32], strides = [1, 1]} : vector<2x128xf32> to vector<2x32xf32>
    %127 = arith.mulf %124, %101 : vector<2x32xf32>
    %128 = arith.mulf %123, %125 : vector<2x32xf32>
    %129 = arith.addf %127, %128 : vector<2x32xf32>
    %130 = math.tanh %129 : vector<2x32xf32>
    %131 = arith.mulf %126, %130 : vector<2x32xf32>
    %c0_26 = arith.constant 0 : index
    %c4 = arith.constant 4 : index
    %132 = vector.load %arg2[%c0_26, %c4] : memref<2x8xf32, #tpu.memory_space<vmem>>, vector<2x1xf32>
    %133 = vector.broadcast %132 : vector<2x1xf32> to vector<2x128xf32>
    %134 = vector.broadcast %3 : vector<1x128xf32> to vector<2x128xf32>
    %135 = arith.mulf %133, %134 : vector<2x128xf32>
    %136 = vector.broadcast %5 : vector<1x128xf32> to vector<2x128xf32>
    %137 = arith.addf %135, %136 : vector<2x128xf32>
    %cst_27 = arith.constant dense<0.000000e+00> : vector<2x128xf32>
    %138 = tpu.matmul %131, %4, %cst_27 {dimension_numbers = #tpu.dot_dimension_numbers<[1], [0], [0], [1], [0, 0, 1, 1], [], []>} : vector<2x32xf32>, vector<32x128xf32>, vector<2x128xf32> -> vector<2x128xf32>
    %139 = arith.addf %137, %138 : vector<2x128xf32>
    %140 = vector.broadcast %14 : vector<1x128xf32> to vector<2x128xf32>
    %141 = arith.mulf %139, %140 : vector<2x128xf32>
    %142 = arith.negf %141 : vector<2x128xf32>
    %143 = math.exp %142 : vector<2x128xf32>
    %cst_28 = arith.constant 1.000000e+00 : f32
    %144 = vector.broadcast %cst_28 : f32 to vector<2x128xf32>
    %145 = arith.addf %144, %143 : vector<2x128xf32>
    %146 = arith.divf %144, %145 : vector<2x128xf32>
    %147 = vector.broadcast %14 : vector<1x128xf32> to vector<2x128xf32>
    %148 = arith.mulf %146, %147 : vector<2x128xf32>
    %149 = vector.broadcast %17 : vector<1x128xf32> to vector<2x128xf32>
    %150 = arith.addf %148, %149 : vector<2x128xf32>
    %151 = vector.extract_strided_slice %150 {offsets = [0, 0], sizes = [2, 32], strides = [1, 1]} : vector<2x128xf32> to vector<2x32xf32>
    %152 = vector.extract_strided_slice %150 {offsets = [0, 32], sizes = [2, 32], strides = [1, 1]} : vector<2x128xf32> to vector<2x32xf32>
    %153 = vector.extract_strided_slice %150 {offsets = [0, 64], sizes = [2, 32], strides = [1, 1]} : vector<2x128xf32> to vector<2x32xf32>
    %154 = vector.extract_strided_slice %150 {offsets = [0, 96], sizes = [2, 32], strides = [1, 1]} : vector<2x128xf32> to vector<2x32xf32>
    %155 = arith.mulf %152, %129 : vector<2x32xf32>
    %156 = arith.mulf %151, %153 : vector<2x32xf32>
    %157 = arith.addf %155, %156 : vector<2x32xf32>
    %158 = math.tanh %157 : vector<2x32xf32>
    %159 = arith.mulf %154, %158 : vector<2x32xf32>
    %c0_29 = arith.constant 0 : index
    %c5 = arith.constant 5 : index
    %160 = vector.load %arg2[%c0_29, %c5] : memref<2x8xf32, #tpu.memory_space<vmem>>, vector<2x1xf32>
    %161 = vector.broadcast %160 : vector<2x1xf32> to vector<2x128xf32>
    %162 = vector.broadcast %3 : vector<1x128xf32> to vector<2x128xf32>
    %163 = arith.mulf %161, %162 : vector<2x128xf32>
    %164 = vector.broadcast %5 : vector<1x128xf32> to vector<2x128xf32>
    %165 = arith.addf %163, %164 : vector<2x128xf32>
    %cst_30 = arith.constant dense<0.000000e+00> : vector<2x128xf32>
    %166 = tpu.matmul %159, %4, %cst_30 {dimension_numbers = #tpu.dot_dimension_numbers<[1], [0], [0], [1], [0, 0, 1, 1], [], []>} : vector<2x32xf32>, vector<32x128xf32>, vector<2x128xf32> -> vector<2x128xf32>
    %167 = arith.addf %165, %166 : vector<2x128xf32>
    %168 = vector.broadcast %14 : vector<1x128xf32> to vector<2x128xf32>
    %169 = arith.mulf %167, %168 : vector<2x128xf32>
    %170 = arith.negf %169 : vector<2x128xf32>
    %171 = math.exp %170 : vector<2x128xf32>
    %cst_31 = arith.constant 1.000000e+00 : f32
    %172 = vector.broadcast %cst_31 : f32 to vector<2x128xf32>
    %173 = arith.addf %172, %171 : vector<2x128xf32>
    %174 = arith.divf %172, %173 : vector<2x128xf32>
    %175 = vector.broadcast %14 : vector<1x128xf32> to vector<2x128xf32>
    %176 = arith.mulf %174, %175 : vector<2x128xf32>
    %177 = vector.broadcast %17 : vector<1x128xf32> to vector<2x128xf32>
    %178 = arith.addf %176, %177 : vector<2x128xf32>
    %179 = vector.extract_strided_slice %178 {offsets = [0, 0], sizes = [2, 32], strides = [1, 1]} : vector<2x128xf32> to vector<2x32xf32>
    %180 = vector.extract_strided_slice %178 {offsets = [0, 32], sizes = [2, 32], strides = [1, 1]} : vector<2x128xf32> to vector<2x32xf32>
    %181 = vector.extract_strided_slice %178 {offsets = [0, 64], sizes = [2, 32], strides = [1, 1]} : vector<2x128xf32> to vector<2x32xf32>
    %182 = vector.extract_strided_slice %178 {offsets = [0, 96], sizes = [2, 32], strides = [1, 1]} : vector<2x128xf32> to vector<2x32xf32>
    %183 = arith.mulf %180, %157 : vector<2x32xf32>
    %184 = arith.mulf %179, %181 : vector<2x32xf32>
    %185 = arith.addf %183, %184 : vector<2x32xf32>
    %186 = math.tanh %185 : vector<2x32xf32>
    %187 = arith.mulf %182, %186 : vector<2x32xf32>
    %c0_32 = arith.constant 0 : index
    %c6 = arith.constant 6 : index
    %188 = vector.load %arg2[%c0_32, %c6] : memref<2x8xf32, #tpu.memory_space<vmem>>, vector<2x1xf32>
    %189 = vector.broadcast %188 : vector<2x1xf32> to vector<2x128xf32>
    %190 = vector.broadcast %3 : vector<1x128xf32> to vector<2x128xf32>
    %191 = arith.mulf %189, %190 : vector<2x128xf32>
    %192 = vector.broadcast %5 : vector<1x128xf32> to vector<2x128xf32>
    %193 = arith.addf %191, %192 : vector<2x128xf32>
    %cst_33 = arith.constant dense<0.000000e+00> : vector<2x128xf32>
    %194 = tpu.matmul %187, %4, %cst_33 {dimension_numbers = #tpu.dot_dimension_numbers<[1], [0], [0], [1], [0, 0, 1, 1], [], []>} : vector<2x32xf32>, vector<32x128xf32>, vector<2x128xf32> -> vector<2x128xf32>
    %195 = arith.addf %193, %194 : vector<2x128xf32>
    %196 = vector.broadcast %14 : vector<1x128xf32> to vector<2x128xf32>
    %197 = arith.mulf %195, %196 : vector<2x128xf32>
    %198 = arith.negf %197 : vector<2x128xf32>
    %199 = math.exp %198 : vector<2x128xf32>
    %cst_34 = arith.constant 1.000000e+00 : f32
    %200 = vector.broadcast %cst_34 : f32 to vector<2x128xf32>
    %201 = arith.addf %200, %199 : vector<2x128xf32>
    %202 = arith.divf %200, %201 : vector<2x128xf32>
    %203 = vector.broadcast %14 : vector<1x128xf32> to vector<2x128xf32>
    %204 = arith.mulf %202, %203 : vector<2x128xf32>
    %205 = vector.broadcast %17 : vector<1x128xf32> to vector<2x128xf32>
    %206 = arith.addf %204, %205 : vector<2x128xf32>
    %207 = vector.extract_strided_slice %206 {offsets = [0, 0], sizes = [2, 32], strides = [1, 1]} : vector<2x128xf32> to vector<2x32xf32>
    %208 = vector.extract_strided_slice %206 {offsets = [0, 32], sizes = [2, 32], strides = [1, 1]} : vector<2x128xf32> to vector<2x32xf32>
    %209 = vector.extract_strided_slice %206 {offsets = [0, 64], sizes = [2, 32], strides = [1, 1]} : vector<2x128xf32> to vector<2x32xf32>
    %210 = vector.extract_strided_slice %206 {offsets = [0, 96], sizes = [2, 32], strides = [1, 1]} : vector<2x128xf32> to vector<2x32xf32>
    %211 = arith.mulf %208, %185 : vector<2x32xf32>
    %212 = arith.mulf %207, %209 : vector<2x32xf32>
    %213 = arith.addf %211, %212 : vector<2x32xf32>
    %214 = math.tanh %213 : vector<2x32xf32>
    %215 = arith.mulf %210, %214 : vector<2x32xf32>
    %c0_35 = arith.constant 0 : index
    %c7 = arith.constant 7 : index
    %216 = vector.load %arg2[%c0_35, %c7] : memref<2x8xf32, #tpu.memory_space<vmem>>, vector<2x1xf32>
    %217 = vector.broadcast %216 : vector<2x1xf32> to vector<2x128xf32>
    %218 = vector.broadcast %3 : vector<1x128xf32> to vector<2x128xf32>
    %219 = arith.mulf %217, %218 : vector<2x128xf32>
    %220 = vector.broadcast %5 : vector<1x128xf32> to vector<2x128xf32>
    %221 = arith.addf %219, %220 : vector<2x128xf32>
    %cst_36 = arith.constant dense<0.000000e+00> : vector<2x128xf32>
    %222 = tpu.matmul %215, %4, %cst_36 {dimension_numbers = #tpu.dot_dimension_numbers<[1], [0], [0], [1], [0, 0, 1, 1], [], []>} : vector<2x32xf32>, vector<32x128xf32>, vector<2x128xf32> -> vector<2x128xf32>
    %223 = arith.addf %221, %222 : vector<2x128xf32>
    %224 = vector.broadcast %14 : vector<1x128xf32> to vector<2x128xf32>
    %225 = arith.mulf %223, %224 : vector<2x128xf32>
    %226 = arith.negf %225 : vector<2x128xf32>
    %227 = math.exp %226 : vector<2x128xf32>
    %cst_37 = arith.constant 1.000000e+00 : f32
    %228 = vector.broadcast %cst_37 : f32 to vector<2x128xf32>
    %229 = arith.addf %228, %227 : vector<2x128xf32>
    %230 = arith.divf %228, %229 : vector<2x128xf32>
    %231 = vector.broadcast %14 : vector<1x128xf32> to vector<2x128xf32>
    %232 = arith.mulf %230, %231 : vector<2x128xf32>
    %233 = vector.broadcast %17 : vector<1x128xf32> to vector<2x128xf32>
    %234 = arith.addf %232, %233 : vector<2x128xf32>
    %235 = vector.extract_strided_slice %234 {offsets = [0, 0], sizes = [2, 32], strides = [1, 1]} : vector<2x128xf32> to vector<2x32xf32>
    %236 = vector.extract_strided_slice %234 {offsets = [0, 32], sizes = [2, 32], strides = [1, 1]} : vector<2x128xf32> to vector<2x32xf32>
    %237 = vector.extract_strided_slice %234 {offsets = [0, 64], sizes = [2, 32], strides = [1, 1]} : vector<2x128xf32> to vector<2x32xf32>
    %238 = vector.extract_strided_slice %234 {offsets = [0, 96], sizes = [2, 32], strides = [1, 1]} : vector<2x128xf32> to vector<2x32xf32>
    %239 = arith.mulf %236, %213 : vector<2x32xf32>
    %240 = arith.mulf %235, %237 : vector<2x32xf32>
    %241 = arith.addf %239, %240 : vector<2x32xf32>
    %242 = math.tanh %241 : vector<2x32xf32>
    %243 = arith.mulf %238, %242 : vector<2x32xf32>
    %c0_38 = arith.constant 0 : index
    %c0_39 = arith.constant 0 : index
    %244 = vector.load %arg9[%c0_38, %c0_39] : memref<2x32xf32, #tpu.memory_space<vmem>>, vector<2x32xf32>
    tpu.vector_store %arg9[%c0_38, %c0_39], %243 {strides = array<i32>} : memref<2x32xf32, #tpu.memory_space<vmem>>, vector<2x32xf32>,
    %c0_40 = arith.constant 0 : index
    %c0_41 = arith.constant 0 : index
    %245 = vector.load %arg10[%c0_40, %c0_41] : memref<2x32xf32, #tpu.memory_space<vmem>>, vector<2x32xf32>
    tpu.vector_store %arg10[%c0_40, %c0_41], %241 {strides = array<i32>} : memref<2x32xf32, #tpu.memory_space<vmem>>, vector<2x32xf32>,
    %c0_i32_42 = arith.constant 0 : i32
    %246 = arith.cmpi eq, %arg1, %c0_i32_42 : i32
    %247 = arith.extui %246 : i1 to i32
    %c0_i32_43 = arith.constant 0 : i32
    %248 = arith.cmpi ne, %247, %c0_i32_43 : i32
    scf.if %248 {
      %c0_44 = arith.constant 0 : index
      %c0_45 = arith.constant 0 : index
      %249 = vector.load %arg9[%c0_44, %c0_45] : memref<2x32xf32, #tpu.memory_space<vmem>>, vector<2x32xf32>
      %c0_46 = arith.constant 0 : index
      %c0_47 = arith.constant 0 : index
      %250 = vector.load %arg6[%c0_46, %c0_47] : memref<1x32xf32, #tpu.memory_space<vmem>>, vector<1x32xf32>
      %251 = vector.broadcast %250 : vector<1x32xf32> to vector<2x32xf32>
      %252 = arith.mulf %249, %251 : vector<2x32xf32>
      %cst_48 = arith.constant dense<0.000000e+00> : vector<2xf32>
      %253 = vector.multi_reduction <add>, %252, %cst_48 [1] : vector<2x32xf32> to vector<2xf32>
      %254 = vector.shape_cast %253 : vector<2xf32> to vector<2x1xf32>
      %c0_49 = arith.constant 0 : index
      %c0_50 = arith.constant 0 : index
      %255 = vector.load %arg7[%c0_49, %c0_50] : memref<1x1xf32, #tpu.memory_space<vmem>>, vector<1x1xf32>
      %256 = vector.broadcast %255 : vector<1x1xf32> to vector<2x1xf32>
      %257 = arith.addf %254, %256 : vector<2x1xf32>
      %258 = vector.shape_cast %257 : vector<2x1xf32> to vector<1x2xf32>
      %c0_51 = arith.constant 0 : index
      %c0_52 = arith.constant 0 : index
      %259 = vector.load %arg8[%c0_51, %c0_52] : memref<1x2xf32, #tpu.memory_space<vmem>>, vector<1x2xf32>
      tpu.vector_store %arg8[%c0_51, %c0_52], %258 {strides = array<i32>} : memref<1x2xf32, #tpu.memory_space<vmem>>, vector<1x2xf32>,
    } else {
    }
    return
  }
  func.func @transform_0(%arg0: i32, %arg1: i32) -> (i32, i32) {
    %c0_i32 = arith.constant 0 : i32
    return %arg0, %arg1 : i32, i32
  }
  func.func @transform_1(%arg0: i32, %arg1: i32) -> (i32, i32) {
    %c0_i32 = arith.constant 0 : i32
    %c0_i32_0 = arith.constant 0 : i32
    %c0_i32_1 = arith.constant 0 : i32
    return %c0_i32, %c0_i32_0 : i32, i32
  }
  func.func @transform_2(%arg0: i32, %arg1: i32) -> (i32, i32) {
    %c0_i32 = arith.constant 0 : i32
    %c0_i32_0 = arith.constant 0 : i32
    %c0_i32_1 = arith.constant 0 : i32
    return %c0_i32, %c0_i32_0 : i32, i32
  }
  func.func @transform_3(%arg0: i32, %arg1: i32) -> (i32, i32) {
    %c0_i32 = arith.constant 0 : i32
    %c0_i32_0 = arith.constant 0 : i32
    %c0_i32_1 = arith.constant 0 : i32
    return %c0_i32, %c0_i32_0 : i32, i32
  }
  func.func @transform_4(%arg0: i32, %arg1: i32) -> (i32, i32) {
    %c0_i32 = arith.constant 0 : i32
    %c0_i32_0 = arith.constant 0 : i32
    %c0_i32_1 = arith.constant 0 : i32
    return %c0_i32, %c0_i32_0 : i32, i32
  }
  func.func @transform_5(%arg0: i32, %arg1: i32) -> (i32, i32) {
    %c0_i32 = arith.constant 0 : i32
    %c0_i32_0 = arith.constant 0 : i32
    %c0_i32_1 = arith.constant 0 : i32
    return %c0_i32, %c0_i32_0 : i32, i32
  }
  func.func @transform_6(%arg0: i32, %arg1: i32) -> (i32, i32) {
    %c0_i32 = arith.constant 0 : i32
    %c0_i32_0 = arith.constant 0 : i32
    return %arg0, %c0_i32 : i32, i32
  }
}

</mosaic_0001>

<llo_original>
// kernel: tpu_custom_call.1
$region0: #{tpu_custom_call.1}
  #allocation0 [shape = 'u32[]', space=smem, size = 0x4, offset = 0x4, fixed_abs, tag = 'smem constant byte address 0x4 - core index']
  #allocation1 [shape = 'u32[144,128]{1,0:T(1,128)}', space=vmem, size = 0x12000, scoped, tag = 'internal scratch']
  #allocation2 [shape = 'f32[2,32]{1,0:T(2,128)}', space=vmem, size = 0x400, scoped, tag = 'scratch operand']
  #allocation3 [shape = 'f32[2,32]{1,0:T(2,128)}', space=vmem, size = 0x400, scoped, tag = 'scratch operand']
  #allocation4 [shape = 'f32[1,1]{1,0:T(1,128)S(1)}', space=vmem, size = 0x200, scoped, tag = 'scoped memory for tpu_custom_call.1']
  %s0 = inlined_call_operand.vmem [shape: f32[2,8], index: 0, kind: input, shape index: {}]
  %s1 = inlined_call_operand.vmem [shape: f32[1,128], index: 1, kind: input, shape index: {}]
  %s2 = inlined_call_operand.hbm [shape: f32[32,128], index: 2, kind: input, shape index: {}]
  %s3 = inlined_call_operand.vmem [shape: f32[1,128], index: 3, kind: input, shape index: {}]
  %s4 = inlined_call_operand.vmem [shape: f32[1,32], index: 4, kind: input, shape index: {}]
  %s5 = inlined_call_operand.<no memory space> [shape: f32[1,1], index: 5, kind: input, shape index: {}]
  %s6 = inlined_call_operand.hbm [shape: f32[1,2], index: 6, kind: output, shape index: {}]
  %s7 = sld [smem:[#allocation0]]
  $region46: #{tpu_custom_call.1} parent=0
    _
  %s9 = ssub.s32 1, %s7
  %s10 = scalar_select 0, %s9, %s7
  %v11 = vstv %s5
  %12 = vst [vmem:[#allocation4] sm:$0x1] %v11
  $region1: #{tpu_custom_call.1} parent=0
    #allocation5 [shape = 'u8[16384]{0}', space=vmem, size = 0x4000, scoped, tag = 'input window, operand 2, single buffered']
    #allocation6 [shape = 's32[1]{0}', space=sflag, size = 0x4, scoped, tag = 'scoped memory for tpu_custom_call.1']
    #allocation7 [shape = 's32[1]{0}', space=sflag, size = 0x4, scoped, tag = 'scoped memory for tpu_custom_call.1']
    #allocation8 [shape = 'u8[512]{0}', space=vmem, size = 0x400, scoped, tag = 'output window, operand 0, single buffered']
    %13 = vsyncpa [#allocation6], 0
    %14 = vsyncpa [#allocation7], 0
    // Predicated region
    $region2: #{tpu_custom_call.1} parent=1 // pred_check
      _
    $region3: #{tpu_custom_call.1} parent=1 // pred_check_branch
      %16 = sbr.rel (0) target = $region5
    $region4: #{tpu_custom_call.1} parent=1 // pred_region
      _
    $region5: #{tpu_custom_call.1} parent=1 // pred_fallthru
      _
    // Predicated region
    $region6: #{tpu_custom_call.1} parent=1 // pred_check
      _
    $region7: #{tpu_custom_call.1} parent=1 // pred_check_branch
      %18 = sbr.rel (0) target = $region9
    $region8: #{tpu_custom_call.1} parent=1 // pred_region
      _
    $region9: #{tpu_custom_call.1} parent=1 // pred_fallthru
      _
    // Predicated region
    $region10: #{tpu_custom_call.1} parent=1 // pred_check
      _
    $region11: #{tpu_custom_call.1} parent=1 // pred_check_branch
      %20 = sbr.rel (0) target = $region13
    $region12: #{tpu_custom_call.1} parent=1 // pred_region
      %s22 = ssub.s32 512, 512
      %23 = vsyncadd [#allocation6], %s22
      %s24 = sshll.u32 [#allocation5], 4
      %s25 = int_to_ptr.vmem [resolvable:$true] %s24
      %30 = dma.hbm_to_vmem [thread:$0]  %s2, 512, %s25, [#allocation6], 128, 128, 8
    $region13: #{tpu_custom_call.1} parent=1 // pred_fallthru
      _
    // Predicated region
    $region14: #{tpu_custom_call.1} parent=1 // pred_check
      _
    $region15: #{tpu_custom_call.1} parent=1 // pred_check_branch
      %32 = sbr.rel (0) target = $region17
    $region16: #{tpu_custom_call.1} parent=1 // pred_region
      _
    $region17: #{tpu_custom_call.1} parent=1 // pred_fallthru
      _
    // Predicated region
    $region18: #{tpu_custom_call.1} parent=1 // pred_check
      _
    $region19: #{tpu_custom_call.1} parent=1 // pred_check_branch
      %34 = sbr.rel (0) target = $region21
    $region20: #{tpu_custom_call.1} parent=1 // pred_region
      _
    $region21: #{tpu_custom_call.1} parent=1 // pred_fallthru
      _
    // Predicated region
    $region22: #{tpu_custom_call.1} parent=1 // pred_check
      _
    $region23: #{tpu_custom_call.1} parent=1 // pred_check_branch
      %36 = sbr.rel (0) target = $region25
    $region24: #{tpu_custom_call.1} parent=1 // pred_region
      _
    $region25: #{tpu_custom_call.1} parent=1 // pred_fallthru
      _
    // Predicated region
    $region26: #{tpu_custom_call.1} parent=1 // pred_check
      _
    $region27: #{tpu_custom_call.1} parent=1 // pred_check_branch
      %38 = sbr.rel (0) target = $region29
    $region28: #{tpu_custom_call.1} parent=1 // pred_region
      %39 = dma.done [#allocation6], 512
    $region29: #{tpu_custom_call.1} parent=1 // pred_fallthru
      _
    %p40 = scmp.eq.s32.totalorder 0, 0
    // Predicated region
    $region30: #{tpu_custom_call.1} parent=1 // pred_check
      %p41 = pneg %p40
    $region31: #{tpu_custom_call.1} parent=1 // pred_check_branch
      %43 = sbr.rel (%p41) target = $region33
    $region32: #{tpu_custom_call.1} parent=1 // pred_region
      %vm44 = vcmask 254976
      %45 = vst.msk [vmem:[#allocation2] sm:$0x3] %vm44, 0.0
      %46 = vst.msk [vmem:[#allocation3] sm:$0x3] %vm44, 0.0
    $region33: #{tpu_custom_call.1} parent=1 // pred_fallthru
      _
    %v47 = vld [vmem:[%s1] sm:$0x1]
    %v48 = vld [vmem:[#allocation5] sm:$0xff]
    %v49 = vld [vmem:[#allocation5 + $0x8] sm:$0xff]
    %v50 = vld [vmem:[#allocation5 + $0x10] sm:$0xff]
    %v51 = vld [vmem:[#allocation5 + $0x18] sm:$0xff]
    %v52 = vld [vmem:[%s3] sm:$0x1]
    %v53 = vlaneseq
    %v54 = vand.u32 %v53, 127
    %vm55 = vcmp.ge.s32.totalorder %v54, 64
    %vm56 = vcmp.lt.s32.totalorder %v54, 96
    %vm57 = vmand %vm55, %vm56
    %v58 = vsel %vm57, 2.0, 1.0
    %v59 = vsel %vm57, -1.0, 0.0
    %v60 = vld [vmem:[#allocation2] sm:$0x3]
    %v61 = vld [vmem:[#allocation3] sm:$0x3]
    %v62 = vld [vmem:[%s0] sm:$0x3]
    %64 = vset.pattern.permute.xlu0 0
    %65 = vperm.xlu0 %64, %v62
    %v66 = vpop.permute.xlu0 %65
    %v69 = vlaneseq
    %v70 = vshrl.u32 %v69, 7
    %v71 = vsub.s32 0, %v70
    %v72 = vrot.slane %v47, %v71
    %v74 = vmul.f32 %v66, %v72
    %v76 = vlaneseq
    %v77 = vshrl.u32 %v76, 7
    %v78 = vsub.s32 0, %v77
    %v79 = vrot.slane %v52, %v78
    %v81 = vadd.f32 %v74, %v79
    %vm82 = vcmask 261120
    %v84 = vsel %vm82, %v60, 0
    %86 = vmatprep.subr.mxu0 0.0
    %87 = vmatpush1.msra.mxu0 %v48
    %88 = vmatprep.subr.mxu0 0.0
    %89 = vmatpush1.msra.mxu0 %v49
    %90 = vmatprep.subr.mxu0 0.0
    %91 = vmatpush1.msra.mxu0 %v50
    %92 = vmatprep.subr.mxu0 0.0
    %93 = vmatpush1.msra.mxu0 %v51
    %94 = vmatprep.subr.mxu0 0.0
    %95 = vmatpush1.msra.mxu0 0.0
    %96 = vmatprep.subr.mxu0 0.0
    %97 = vmatpush1.msra.mxu0 0.0
    %98 = vmatprep.subr.mxu0 0.0
    %99 = vmatpush1.msra.mxu0 0.0
    %100 = vmatprep.subr.mxu0 0.0
    %101 = vmatpush1.msra.mxu0 0.0
    %102 = vmatprep.subr.mxu0 0.0
    %103 = vmatpush1.msra.mxu0 0.0
    %104 = vmatprep.subr.mxu0 0.0
    %105 = vmatpush1.msra.mxu0 0.0
    %106 = vmatprep.subr.mxu0 0.0
    %107 = vmatpush1.msra.mxu0 0.0
    %108 = vmatprep.subr.mxu0 0.0
    %109 = vmatpush1.msra.mxu0 0.0
    %110 = vmatprep.subr.mxu0 0.0
    %111 = vmatpush1.msra.mxu0 0.0
    %112 = vmatprep.subr.mxu0 0.0
    %113 = vmatpush1.msra.mxu0 0.0
    %114 = vmatprep.subr.mxu0 0.0
    %115 = vmatpush1.msra.mxu0 0.0
    %116 = vmatprep.subr.mxu0 0.0
    %117 = vmatpush1.msra.mxu0 0.0
    %118 = vmatprep.subr.mxu0 0.0
    %119 = vmatpush1.msra.mxu0 0.0
    %120 = vmatprep.subr.mxu0 0.0
    %121 = vmatpush1.msra.mxu0 0.0
    %122 = vmatprep.subr.mxu0 0.0
    %123 = vmatpush1.msra.mxu0 0.0
    %124 = vmatprep.subr.mxu0 0.0
    %125 = vmatpush1.msra.mxu0 0.0
    %126 = vmatprep.subr.mxu0 0.0
    %127 = vmatpush1.msra.mxu0 0.0
    %128 = vmatprep.subr.mxu0 0.0
    %129 = vmatpush1.msra.mxu0 0.0
    %130 = vmatprep.subr.mxu0 0.0
    %131 = vmatpush1.msra.mxu0 0.0
    %132 = vmatprep.subr.mxu0 0.0
    %133 = vmatpush1.msra.mxu0 0.0
    %134 = vmatprep.subr.mxu0 0.0
    %135 = vmatpush1.msra.mxu0 0.0
    %136 = vmatprep.subr.mxu0 0.0
    %137 = vmatpush1.msra.mxu0 0.0
    %138 = vmatprep.subr.mxu0 0.0
    %139 = vmatpush1.msra.mxu0 0.0
    %140 = vmatprep.subr.mxu0 0.0
    %141 = vmatpush1.msra.mxu0 0.0
    %142 = vmatprep.subr.mxu0 0.0
    %143 = vmatpush1.msra.mxu0 0.0
    %144 = vmatprep.subr.mxu0 0.0
    %145 = vmatpush1.msra.mxu0 0.0
    %146 = vmatprep.subr.mxu0 0.0
    %147 = vmatpush1.msra.mxu0 0.0
    %148 = vmatprep.subr.mxu0 0.0
    %149 = vmatpush1.msra.mxu0 0.0
    %150 = vmatprep.mubr.f32.mxu0 0.0
    %151 = vmatmul.mubr.f32.gmra.mrb[0].mxu0 %v84
    %v152 = vpop.f32.mrb[0].mxu0
    %v153 = vadd.f32 0.0, %v152
    %v154 = vpop.f32.mrb[0].mxu0
    %155 = vdwg.mxu0
    %v156 = vadd.f32 %v81, %v153
    %v157 = vmul.f32 %v156, %v58
    %v158 = vxor.u32 %v157, 2147483648
    %v159 = vmul.f32 %v158, 1.442695
    %v160 = vpow.pop %v159
    %v161 = vadd.f32 %v160, 1.0
    %v162 = vrcp.pop %v161
    %v163 = vmul.f32 1.0, %v162
    %v164 = vmul.f32 %v163, %v58
    %v165 = vadd.f32 %v164, %v59
    %167 = vrot.lane.b32.xlu0 %v61, 32
    %v168 = vpop.permute.xlu0 %167
    %v170 = vmul.f32 %v165, %v168
    %172 = vrot.lane.b32.xlu0 %v165, 64
    %v173 = vpop.permute.xlu0 %172
    %v175 = vmul.f32 %v165, %v173
    %177 = vrot.lane.b32.xlu0 %v175, 32
    %v178 = vpop.permute.xlu0 %177
    %v180 = vadd.f32 %v170, %v178
    %v181 = vtanh.pop %v180
    %183 = vrot.lane.b32.xlu0 %v181, 64
    %v184 = vpop.permute.xlu0 %183
    %v186 = vmul.f32 %v165, %v184
    %187 = vset.pattern.permute.xlu0 1
    %188 = vperm.xlu0 %187, %v62
    %v189 = vpop.permute.xlu0 %188
    %v191 = vmul.f32 %v189, %v72
    %v192 = vadd.f32 %v191, %v79
    %194 = vrot.lane.b32.xlu0 %v186, 32
    %v195 = vpop.permute.xlu0 %194
    %v196 = vsel %vm82, %v195, 0
    %198 = vmatprep.subr.mxu0 0.0
    %199 = vmatpush1.msra.mxu0 %v48
    %200 = vmatprep.subr.mxu0 0.0
    %201 = vmatpush1.msra.mxu0 %v49
    %202 = vmatprep.subr.mxu0 0.0
    %203 = vmatpush1.msra.mxu0 %v50
    %204 = vmatprep.subr.mxu0 0.0
    %205 = vmatpush1.msra.mxu0 %v51
    %206 = vmatprep.subr.mxu0 0.0
    %207 = vmatpush1.msra.mxu0 0.0
    %208 = vmatprep.subr.mxu0 0.0
    %209 = vmatpush1.msra.mxu0 0.0
    %210 = vmatprep.subr.mxu0 0.0
    %211 = vmatpush1.msra.mxu0 0.0
    %212 = vmatprep.subr.mxu0 0.0
    %213 = vmatpush1.msra.mxu0 0.0
    %214 = vmatprep.subr.mxu0 0.0
    %215 = vmatpush1.msra.mxu0 0.0
    %216 = vmatprep.subr.mxu0 0.0
    %217 = vmatpush1.msra.mxu0 0.0
    %218 = vmatprep.subr.mxu0 0.0
    %219 = vmatpush1.msra.mxu0 0.0
    %220 = vmatprep.subr.mxu0 0.0
    %221 = vmatpush1.msra.mxu0 0.0
    %222 = vmatprep.subr.mxu0 0.0
    %223 = vmatpush1.msra.mxu0 0.0
    %224 = vmatprep.subr.mxu0 0.0
    %225 = vmatpush1.msra.mxu0 0.0
    %226 = vmatprep.subr.mxu0 0.0
    %227 = vmatpush1.msra.mxu0 0.0
    %228 = vmatprep.subr.mxu0 0.0
    %229 = vmatpush1.msra.mxu0 0.0
    %230 = vmatprep.subr.mxu0 0.0
    %231 = vmatpush1.msra.mxu0 0.0
    %232 = vmatprep.subr.mxu0 0.0
    %233 = vmatpush1.msra.mxu0 0.0
    %234 = vmatprep.subr.mxu0 0.0
    %235 = vmatpush1.msra.mxu0 0.0
    %236 = vmatprep.subr.mxu0 0.0
    %237 = vmatpush1.msra.mxu0 0.0
    %238 = vmatprep.subr.mxu0 0.0
    %239 = vmatpush1.msra.mxu0 0.0
    %240 = vmatprep.subr.mxu0 0.0
    %241 = vmatpush1.msra.mxu0 0.0
    %242 = vmatprep.subr.mxu0 0.0
    %243 = vmatpush1.msra.mxu0 0.0
    %244 = vmatprep.subr.mxu0 0.0
    %245 = vmatpush1.msra.mxu0 0.0
    %246 = vmatprep.subr.mxu0 0.0
    %247 = vmatpush1.msra.mxu0 0.0
    %248 = vmatprep.subr.mxu0 0.0
    %249 = vmatpush1.msra.mxu0 0.0
    %250 = vmatprep.subr.mxu0 0.0
    %251 = vmatpush1.msra.mxu0 0.0
    %252 = vmatprep.subr.mxu0 0.0
    %253 = vmatpush1.msra.mxu0 0.0
    %254 = vmatprep.subr.mxu0 0.0
    %255 = vmatpush1.msra.mxu0 0.0
    %256 = vmatprep.subr.mxu0 0.0
    %257 = vmatpush1.msra.mxu0 0.0
    %258 = vmatprep.subr.mxu0 0.0
    %259 = vmatpush1.msra.mxu0 0.0
    %260 = vmatprep.subr.mxu0 0.0
    %261 = vmatpush1.msra.mxu0 0.0
    %262 = vmatprep.mubr.f32.mxu0 0.0
    %263 = vmatmul.mubr.f32.gmra.mrb[0].mxu0 %v196
    %v264 = vpop.f32.mrb[0].mxu0
    %v265 = vadd.f32 0.0, %v264
    %v266 = vpop.f32.mrb[0].mxu0
    %267 = vdwg.mxu0
    %v268 = vadd.f32 %v192, %v265
    %v269 = vmul.f32 %v268, %v58
    %v270 = vxor.u32 %v269, 2147483648
    %v271 = vmul.f32 %v270, 1.442695
    %v272 = vpow.pop %v271
    %v273 = vadd.f32 %v272, 1.0
    %v274 = vrcp.pop %v273
    %v275 = vmul.f32 1.0, %v274
    %v276 = vmul.f32 %v275, %v58
    %v277 = vadd.f32 %v276, %v59
    %v278 = vmul.f32 %v277, %v180
    %280 = vrot.lane.b32.xlu0 %v277, 64
    %v281 = vpop.permute.xlu0 %280
    %v283 = vmul.f32 %v277, %v281
    %285 = vrot.lane.b32.xlu0 %v283, 32
    %v286 = vpop.permute.xlu0 %285
    %v288 = vadd.f32 %v278, %v286
    %v289 = vtanh.pop %v288
    %291 = vrot.lane.b32.xlu0 %v289, 64
    %v292 = vpop.permute.xlu0 %291
    %v294 = vmul.f32 %v277, %v292
    %295 = vset.pattern.permute.xlu0 2
    %296 = vperm.xlu0 %295, %v62
    %v297 = vpop.permute.xlu0 %296
    %v299 = vmul.f32 %v297, %v72
    %v300 = vadd.f32 %v299, %v79
    %302 = vrot.lane.b32.xlu0 %v294, 32
    %v303 = vpop.permute.xlu0 %302
    %v304 = vsel %vm82, %v303, 0
    %306 = vmatprep.subr.mxu0 0.0
    %307 = vmatpush1.msra.mxu0 %v48
    %308 = vmatprep.subr.mxu0 0.0
    %309 = vmatpush1.msra.mxu0 %v49
    %310 = vmatprep.subr.mxu0 0.0
    %311 = vmatpush1.msra.mxu0 %v50
    %312 = vmatprep.subr.mxu0 0.0
    %313 = vmatpush1.msra.mxu0 %v51
    %314 = vmatprep.subr.mxu0 0.0
    %315 = vmatpush1.msra.mxu0 0.0
    %316 = vmatprep.subr.mxu0 0.0
    %317 = vmatpush1.msra.mxu0 0.0
    %318 = vmatprep.subr.mxu0 0.0
    %319 = vmatpush1.msra.mxu0 0.0
    %320 = vmatprep.subr.mxu0 0.0
    %321 = vmatpush1.msra.mxu0 0.0
    %322 = vmatprep.subr.mxu0 0.0
    %323 = vmatpush1.msra.mxu0 0.0
    %324 = vmatprep.subr.mxu0 0.0
    %325 = vmatpush1.msra.mxu0 0.0
    %326 = vmatprep.subr.mxu0 0.0
    %327 = vmatpush1.msra.mxu0 0.0
    %328 = vmatprep.subr.mxu0 0.0
    %329 = vmatpush1.msra.mxu0 0.0
    %330 = vmatprep.subr.mxu0 0.0
    %331 = vmatpush1.msra.mxu0 0.0
    %332 = vmatprep.subr.mxu0 0.0
    %333 = vmatpush1.msra.mxu0 0.0
    %334 = vmatprep.subr.mxu0 0.0
    %335 = vmatpush1.msra.mxu0 0.0
    %336 = vmatprep.subr.mxu0 0.0
    %337 = vmatpush1.msra.mxu0 0.0
    %338 = vmatprep.subr.mxu0 0.0
    %339 = vmatpush1.msra.mxu0 0.0
    %340 = vmatprep.subr.mxu0 0.0
    %341 = vmatpush1.msra.mxu0 0.0
    %342 = vmatprep.subr.mxu0 0.0
    %343 = vmatpush1.msra.mxu0 0.0
    %344 = vmatprep.subr.mxu0 0.0
    %345 = vmatpush1.msra.mxu0 0.0
    %346 = vmatprep.subr.mxu0 0.0
    %347 = vmatpush1.msra.mxu0 0.0
    %348 = vmatprep.subr.mxu0 0.0
    %349 = vmatpush1.msra.mxu0 0.0
    %350 = vmatprep.subr.mxu0 0.0
    %351 = vmatpush1.msra.mxu0 0.0
    %352 = vmatprep.subr.mxu0 0.0
    %353 = vmatpush1.msra.mxu0 0.0
    %354 = vmatprep.subr.mxu0 0.0
    %355 = vmatpush1.msra.mxu0 0.0
    %356 = vmatprep.subr.mxu0 0.0
    %357 = vmatpush1.msra.mxu0 0.0
    %358 = vmatprep.subr.mxu0 0.0
    %359 = vmatpush1.msra.mxu0 0.0
    %360 = vmatprep.subr.mxu0 0.0
    %361 = vmatpush1.msra.mxu0 0.0
    %362 = vmatprep.subr.mxu0 0.0
    %363 = vmatpush1.msra.mxu0 0.0
    %364 = vmatprep.subr.mxu0 0.0
    %365 = vmatpush1.msra.mxu0 0.0
    %366 = vmatprep.subr.mxu0 0.0
    %367 = vmatpush1.msra.mxu0 0.0
    %368 = vmatprep.subr.mxu0 0.0
    %369 = vmatpush1.msra.mxu0 0.0
    %370 = vmatprep.mubr.f32.mxu0 0.0
    %371 = vmatmul.mubr.f32.gmra.mrb[0].mxu0 %v304
    %v372 = vpop.f32.mrb[0].mxu0
    %v373 = vadd.f32 0.0, %v372
    %v374 = vpop.f32.mrb[0].mxu0
    %375 = vdwg.mxu0
    %v376 = vadd.f32 %v300, %v373
    %v377 = vmul.f32 %v376, %v58
    %v378 = vxor.u32 %v377, 2147483648
    %v379 = vmul.f32 %v378, 1.442695
    %v380 = vpow.pop %v379
    %v381 = vadd.f32 %v380, 1.0
    %v382 = vrcp.pop %v381
    %v383 = vmul.f32 1.0, %v382
    %v384 = vmul.f32 %v383, %v58
    %v385 = vadd.f32 %v384, %v59
    %v386 = vmul.f32 %v385, %v288
    %388 = vrot.lane.b32.xlu0 %v385, 64
    %v389 = vpop.permute.xlu0 %388
    %v391 = vmul.f32 %v385, %v389
    %393 = vrot.lane.b32.xlu0 %v391, 32
    %v394 = vpop.permute.xlu0 %393
    %v396 = vadd.f32 %v386, %v394
    %v397 = vtanh.pop %v396
    %399 = vrot.lane.b32.xlu0 %v397, 64
    %v400 = vpop.permute.xlu0 %399
    %v402 = vmul.f32 %v385, %v400
    %403 = vset.pattern.permute.xlu0 3
    %404 = vperm.xlu0 %403, %v62
    %v405 = vpop.permute.xlu0 %404
    %v407 = vmul.f32 %v405, %v72
    %v408 = vadd.f32 %v407, %v79
    %410 = vrot.lane.b32.xlu0 %v402, 32
    %v411 = vpop.permute.xlu0 %410
    %v412 = vsel %vm82, %v411, 0
    %414 = vmatprep.subr.mxu0 0.0
    %415 = vmatpush1.msra.mxu0 %v48
    %416 = vmatprep.subr.mxu0 0.0
    %417 = vmatpush1.msra.mxu0 %v49
    %418 = vmatprep.subr.mxu0 0.0
    %419 = vmatpush1.msra.mxu0 %v50
    %420 = vmatprep.subr.mxu0 0.0
    %421 = vmatpush1.msra.mxu0 %v51
    %422 = vmatprep.subr.mxu0 0.0
    %423 = vmatpush1.msra.mxu0 0.0
    %424 = vmatprep.subr.mxu0 0.0
    %425 = vmatpush1.msra.mxu0 0.0
    %426 = vmatprep.subr.mxu0 0.0
    %427 = vmatpush1.msra.mxu0 0.0
    %428 = vmatprep.subr.mxu0 0.0
    %429 = vmatpush1.msra.mxu0 0.0
    %430 = vmatprep.subr.mxu0 0.0
    %431 = vmatpush1.msra.mxu0 0.0
    %432 = vmatprep.subr.mxu0 0.0
    %433 = vmatpush1.msra.mxu0 0.0
    %434 = vmatprep.subr.mxu0 0.0
    %435 = vmatpush1.msra.mxu0 0.0
    %436 = vmatprep.subr.mxu0 0.0
    %437 = vmatpush1.msra.mxu0 0.0
    %438 = vmatprep.subr.mxu0 0.0
    %439 = vmatpush1.msra.mxu0 0.0
    %440 = vmatprep.subr.mxu0 0.0
    %441 = vmatpush1.msra.mxu0 0.0
    %442 = vmatprep.subr.mxu0 0.0
    %443 = vmatpush1.msra.mxu0 0.0
    %444 = vmatprep.subr.mxu0 0.0
    %445 = vmatpush1.msra.mxu0 0.0
    %446 = vmatprep.subr.mxu0 0.0
    %447 = vmatpush1.msra.mxu0 0.0
    %448 = vmatprep.subr.mxu0 0.0
    %449 = vmatpush1.msra.mxu0 0.0
    %450 = vmatprep.subr.mxu0 0.0
    %451 = vmatpush1.msra.mxu0 0.0
    %452 = vmatprep.subr.mxu0 0.0
    %453 = vmatpush1.msra.mxu0 0.0
    %454 = vmatprep.subr.mxu0 0.0
    %455 = vmatpush1.msra.mxu0 0.0
    %456 = vmatprep.subr.mxu0 0.0
    %457 = vmatpush1.msra.mxu0 0.0
    %458 = vmatprep.subr.mxu0 0.0
    %459 = vmatpush1.msra.mxu0 0.0
    %460 = vmatprep.subr.mxu0 0.0
    %461 = vmatpush1.msra.mxu0 0.0
    %462 = vmatprep.subr.mxu0 0.0
    %463 = vmatpush1.msra.mxu0 0.0
    %464 = vmatprep.subr.mxu0 0.0
    %465 = vmatpush1.msra.mxu0 0.0
    %466 = vmatprep.subr.mxu0 0.0
    %467 = vmatpush1.msra.mxu0 0.0
    %468 = vmatprep.subr.mxu0 0.0
    %469 = vmatpush1.msra.mxu0 0.0
    %470 = vmatprep.subr.mxu0 0.0
    %471 = vmatpush1.msra.mxu0 0.0
    %472 = vmatprep.subr.mxu0 0.0
    %473 = vmatpush1.msra.mxu0 0.0
    %474 = vmatprep.subr.mxu0 0.0
    %475 = vmatpush1.msra.mxu0 0.0
    %476 = vmatprep.subr.mxu0 0.0
    %477 = vmatpush1.msra.mxu0 0.0
    %478 = vmatprep.mubr.f32.mxu0 0.0
    %479 = vmatmul.mubr.f32.gmra.mrb[0].mxu0 %v412
    %v480 = vpop.f32.mrb[0].mxu0
    %v481 = vadd.f32 0.0, %v480
    %v482 = vpop.f32.mrb[0].mxu0
    %483 = vdwg.mxu0
    %v484 = vadd.f32 %v408, %v481
    %v485 = vmul.f32 %v484, %v58
    %v486 = vxor.u32 %v485, 2147483648
    %v487 = vmul.f32 %v486, 1.442695
    %v488 = vpow.pop %v487
    %v489 = vadd.f32 %v488, 1.0
    %v490 = vrcp.pop %v489
    %v491 = vmul.f32 1.0, %v490
    %v492 = vmul.f32 %v491, %v58
    %v493 = vadd.f32 %v492, %v59
    %v494 = vmul.f32 %v493, %v396
    %496 = vrot.lane.b32.xlu0 %v493, 64
    %v497 = vpop.permute.xlu0 %496
    %v499 = vmul.f32 %v493, %v497
    %501 = vrot.lane.b32.xlu0 %v499, 32
    %v502 = vpop.permute.xlu0 %501
    %v504 = vadd.f32 %v494, %v502
    %v505 = vtanh.pop %v504
    %507 = vrot.lane.b32.xlu0 %v505, 64
    %v508 = vpop.permute.xlu0 %507
    %v510 = vmul.f32 %v493, %v508
    %511 = vset.pattern.permute.xlu0 4
    %512 = vperm.xlu0 %511, %v62
    %v513 = vpop.permute.xlu0 %512
    %v515 = vmul.f32 %v513, %v72
    %v516 = vadd.f32 %v515, %v79
    %518 = vrot.lane.b32.xlu0 %v510, 32
    %v519 = vpop.permute.xlu0 %518
    %v520 = vsel %vm82, %v519, 0
    %522 = vmatprep.subr.mxu0 0.0
    %523 = vmatpush1.msra.mxu0 %v48
    %524 = vmatprep.subr.mxu0 0.0
    %525 = vmatpush1.msra.mxu0 %v49
    %526 = vmatprep.subr.mxu0 0.0
    %527 = vmatpush1.msra.mxu0 %v50
    %528 = vmatprep.subr.mxu0 0.0
    %529 = vmatpush1.msra.mxu0 %v51
    %530 = vmatprep.subr.mxu0 0.0
    %531 = vmatpush1.msra.mxu0 0.0
    %532 = vmatprep.subr.mxu0 0.0
    %533 = vmatpush1.msra.mxu0 0.0
    %534 = vmatprep.subr.mxu0 0.0
    %535 = vmatpush1.msra.mxu0 0.0
    %536 = vmatprep.subr.mxu0 0.0
    %537 = vmatpush1.msra.mxu0 0.0
    %538 = vmatprep.subr.mxu0 0.0
    %539 = vmatpush1.msra.mxu0 0.0
    %540 = vmatprep.subr.mxu0 0.0
    %541 = vmatpush1.msra.mxu0 0.0
    %542 = vmatprep.subr.mxu0 0.0
    %543 = vmatpush1.msra.mxu0 0.0
    %544 = vmatprep.subr.mxu0 0.0
    %545 = vmatpush1.msra.mxu0 0.0
    %546 = vmatprep.subr.mxu0 0.0
    %547 = vmatpush1.msra.mxu0 0.0
    %548 = vmatprep.subr.mxu0 0.0
    %549 = vmatpush1.msra.mxu0 0.0
    %550 = vmatprep.subr.mxu0 0.0
    %551 = vmatpush1.msra.mxu0 0.0
    %552 = vmatprep.subr.mxu0 0.0
    %553 = vmatpush1.msra.mxu0 0.0
    %554 = vmatprep.subr.mxu0 0.0
    %555 = vmatpush1.msra.mxu0 0.0
    %556 = vmatprep.subr.mxu0 0.0
    %557 = vmatpush1.msra.mxu0 0.0
    %558 = vmatprep.subr.mxu0 0.0
    %559 = vmatpush1.msra.mxu0 0.0
    %560 = vmatprep.subr.mxu0 0.0
    %561 = vmatpush1.msra.mxu0 0.0
    %562 = vmatprep.subr.mxu0 0.0
    %563 = vmatpush1.msra.mxu0 0.0
    %564 = vmatprep.subr.mxu0 0.0
    %565 = vmatpush1.msra.mxu0 0.0
    %566 = vmatprep.subr.mxu0 0.0
    %567 = vmatpush1.msra.mxu0 0.0
    %568 = vmatprep.subr.mxu0 0.0
    %569 = vmatpush1.msra.mxu0 0.0
    %570 = vmatprep.subr.mxu0 0.0
    %571 = vmatpush1.msra.mxu0 0.0
    %572 = vmatprep.subr.mxu0 0.0
    %573 = vmatpush1.msra.mxu0 0.0
    %574 = vmatprep.subr.mxu0 0.0
    %575 = vmatpush1.msra.mxu0 0.0
    %576 = vmatprep.subr.mxu0 0.0
    %577 = vmatpush1.msra.mxu0 0.0
    %578 = vmatprep.subr.mxu0 0.0
    %579 = vmatpush1.msra.mxu0 0.0
    %580 = vmatprep.subr.mxu0 0.0
    %581 = vmatpush1.msra.mxu0 0.0
    %582 = vmatprep.subr.mxu0 0.0
    %583 = vmatpush1.msra.mxu0 0.0
    %584 = vmatprep.subr.mxu0 0.0
    %585 = vmatpush1.msra.mxu0 0.0
    %586 = vmatprep.mubr.f32.mxu0 0.0
    %587 = vmatmul.mubr.f32.gmra.mrb[0].mxu0 %v520
    %v588 = vpop.f32.mrb[0].mxu0
    %v589 = vadd.f32 0.0, %v588
    %v590 = vpop.f32.mrb[0].mxu0
    %591 = vdwg.mxu0
    %v592 = vadd.f32 %v516, %v589
    %v593 = vmul.f32 %v592, %v58
    %v594 = vxor.u32 %v593, 2147483648
    %v595 = vmul.f32 %v594, 1.442695
    %v596 = vpow.pop %v595
    %v597 = vadd.f32 %v596, 1.0
    %v598 = vrcp.pop %v597
    %v599 = vmul.f32 1.0, %v598
    %v600 = vmul.f32 %v599, %v58
    %v601 = vadd.f32 %v600, %v59
    %v602 = vmul.f32 %v601, %v504
    %604 = vrot.lane.b32.xlu0 %v601, 64
    %v605 = vpop.permute.xlu0 %604
    %v607 = vmul.f32 %v601, %v605
    %609 = vrot.lane.b32.xlu0 %v607, 32
    %v610 = vpop.permute.xlu0 %609
    %v612 = vadd.f32 %v602, %v610
    %v613 = vtanh.pop %v612
    %615 = vrot.lane.b32.xlu0 %v613, 64
    %v616 = vpop.permute.xlu0 %615
    %v618 = vmul.f32 %v601, %v616
    %619 = vset.pattern.permute.xlu0 5
    %620 = vperm.xlu0 %619, %v62
    %v621 = vpop.permute.xlu0 %620
    %v623 = vmul.f32 %v621, %v72
    %v624 = vadd.f32 %v623, %v79
    %626 = vrot.lane.b32.xlu0 %v618, 32
    %v627 = vpop.permute.xlu0 %626
    %v628 = vsel %vm82, %v627, 0
    %630 = vmatprep.subr.mxu0 0.0
    %631 = vmatpush1.msra.mxu0 %v48
    %632 = vmatprep.subr.mxu0 0.0
    %633 = vmatpush1.msra.mxu0 %v49
    %634 = vmatprep.subr.mxu0 0.0
    %635 = vmatpush1.msra.mxu0 %v50
    %636 = vmatprep.subr.mxu0 0.0
    %637 = vmatpush1.msra.mxu0 %v51
    %638 = vmatprep.subr.mxu0 0.0
    %639 = vmatpush1.msra.mxu0 0.0
    %640 = vmatprep.subr.mxu0 0.0
    %641 = vmatpush1.msra.mxu0 0.0
    %642 = vmatprep.subr.mxu0 0.0
    %643 = vmatpush1.msra.mxu0 0.0
    %644 = vmatprep.subr.mxu0 0.0
    %645 = vmatpush1.msra.mxu0 0.0
    %646 = vmatprep.subr.mxu0 0.0
    %647 = vmatpush1.msra.mxu0 0.0
    %648 = vmatprep.subr.mxu0 0.0
    %649 = vmatpush1.msra.mxu0 0.0
    %650 = vmatprep.subr.mxu0 0.0
    %651 = vmatpush1.msra.mxu0 0.0
    %652 = vmatprep.subr.mxu0 0.0
    %653 = vmatpush1.msra.mxu0 0.0
    %654 = vmatprep.subr.mxu0 0.0
    %655 = vmatpush1.msra.mxu0 0.0
    %656 = vmatprep.subr.mxu0 0.0
    %657 = vmatpush1.msra.mxu0 0.0
    %658 = vmatprep.subr.mxu0 0.0
    %659 = vmatpush1.msra.mxu0 0.0
    %660 = vmatprep.subr.mxu0 0.0
    %661 = vmatpush1.msra.mxu0 0.0
    %662 = vmatprep.subr.mxu0 0.0
    %663 = vmatpush1.msra.mxu0 0.0
    %664 = vmatprep.subr.mxu0 0.0
    %665 = vmatpush1.msra.mxu0 0.0
    %666 = vmatprep.subr.mxu0 0.0
    %667 = vmatpush1.msra.mxu0 0.0
    %668 = vmatprep.subr.mxu0 0.0
    %669 = vmatpush1.msra.mxu0 0.0
    %670 = vmatprep.subr.mxu0 0.0
    %671 = vmatpush1.msra.mxu0 0.0
    %672 = vmatprep.subr.mxu0 0.0
    %673 = vmatpush1.msra.mxu0 0.0
    %674 = vmatprep.subr.mxu0 0.0
    %675 = vmatpush1.msra.mxu0 0.0
    %676 = vmatprep.subr.mxu0 0.0
    %677 = vmatpush1.msra.mxu0 0.0
    %678 = vmatprep.subr.mxu0 0.0
    %679 = vmatpush1.msra.mxu0 0.0
    %680 = vmatprep.subr.mxu0 0.0
    %681 = vmatpush1.msra.mxu0 0.0
    %682 = vmatprep.subr.mxu0 0.0
    %683 = vmatpush1.msra.mxu0 0.0
    %684 = vmatprep.subr.mxu0 0.0
    %685 = vmatpush1.msra.mxu0 0.0
    %686 = vmatprep.subr.mxu0 0.0
    %687 = vmatpush1.msra.mxu0 0.0
    %688 = vmatprep.subr.mxu0 0.0
    %689 = vmatpush1.msra.mxu0 0.0
    %690 = vmatprep.subr.mxu0 0.0
    %691 = vmatpush1.msra.mxu0 0.0
    %692 = vmatprep.subr.mxu0 0.0
    %693 = vmatpush1.msra.mxu0 0.0
    %694 = vmatprep.mubr.f32.mxu0 0.0
    %695 = vmatmul.mubr.f32.gmra.mrb[0].mxu0 %v628
    %v696 = vpop.f32.mrb[0].mxu0
    %v697 = vadd.f32 0.0, %v696
    %v698 = vpop.f32.mrb[0].mxu0
    %699 = vdwg.mxu0
    %v700 = vadd.f32 %v624, %v697
    %v701 = vmul.f32 %v700, %v58
    %v702 = vxor.u32 %v701, 2147483648
    %v703 = vmul.f32 %v702, 1.442695
    %v704 = vpow.pop %v703
    %v705 = vadd.f32 %v704, 1.0
    %v706 = vrcp.pop %v705
    %v707 = vmul.f32 1.0, %v706
    %v708 = vmul.f32 %v707, %v58
    %v709 = vadd.f32 %v708, %v59
    %v710 = vmul.f32 %v709, %v612
    %712 = vrot.lane.b32.xlu0 %v709, 64
    %v713 = vpop.permute.xlu0 %712
    %v715 = vmul.f32 %v709, %v713
    %717 = vrot.lane.b32.xlu0 %v715, 32
    %v718 = vpop.permute.xlu0 %717
    %v720 = vadd.f32 %v710, %v718
    %v721 = vtanh.pop %v720
    %723 = vrot.lane.b32.xlu0 %v721, 64
    %v724 = vpop.permute.xlu0 %723
    %v726 = vmul.f32 %v709, %v724
    %727 = vset.pattern.permute.xlu0 6
    %728 = vperm.xlu0 %727, %v62
    %v729 = vpop.permute.xlu0 %728
    %v731 = vmul.f32 %v729, %v72
    %v732 = vadd.f32 %v731, %v79
    %734 = vrot.lane.b32.xlu0 %v726, 32
    %v735 = vpop.permute.xlu0 %734
    %v736 = vsel %vm82, %v735, 0
    %738 = vmatprep.subr.mxu0 0.0
    %739 = vmatpush1.msra.mxu0 %v48
    %740 = vmatprep.subr.mxu0 0.0
    %741 = vmatpush1.msra.mxu0 %v49
    %742 = vmatprep.subr.mxu0 0.0
    %743 = vmatpush1.msra.mxu0 %v50
    %744 = vmatprep.subr.mxu0 0.0
    %745 = vmatpush1.msra.mxu0 %v51
    %746 = vmatprep.subr.mxu0 0.0
    %747 = vmatpush1.msra.mxu0 0.0
    %748 = vmatprep.subr.mxu0 0.0
    %749 = vmatpush1.msra.mxu0 0.0
    %750 = vmatprep.subr.mxu0 0.0
    %751 = vmatpush1.msra.mxu0 0.0
    %752 = vmatprep.subr.mxu0 0.0
    %753 = vmatpush1.msra.mxu0 0.0
    %754 = vmatprep.subr.mxu0 0.0
    %755 = vmatpush1.msra.mxu0 0.0
    %756 = vmatprep.subr.mxu0 0.0
    %757 = vmatpush1.msra.mxu0 0.0
    %758 = vmatprep.subr.mxu0 0.0
    %759 = vmatpush1.msra.mxu0 0.0
    %760 = vmatprep.subr.mxu0 0.0
    %761 = vmatpush1.msra.mxu0 0.0
    %762 = vmatprep.subr.mxu0 0.0
    %763 = vmatpush1.msra.mxu0 0.0
    %764 = vmatprep.subr.mxu0 0.0
    %765 = vmatpush1.msra.mxu0 0.0
    %766 = vmatprep.subr.mxu0 0.0
    %767 = vmatpush1.msra.mxu0 0.0
    %768 = vmatprep.subr.mxu0 0.0
    %769 = vmatpush1.msra.mxu0 0.0
    %770 = vmatprep.subr.mxu0 0.0
    %771 = vmatpush1.msra.mxu0 0.0
    %772 = vmatprep.subr.mxu0 0.0
    %773 = vmatpush1.msra.mxu0 0.0
    %774 = vmatprep.subr.mxu0 0.0
    %775 = vmatpush1.msra.mxu0 0.0
    %776 = vmatprep.subr.mxu0 0.0
    %777 = vmatpush1.msra.mxu0 0.0
    %778 = vmatprep.subr.mxu0 0.0
    %779 = vmatpush1.msra.mxu0 0.0
    %780 = vmatprep.subr.mxu0 0.0
    %781 = vmatpush1.msra.mxu0 0.0
    %782 = vmatprep.subr.mxu0 0.0
    %783 = vmatpush1.msra.mxu0 0.0
    %784 = vmatprep.subr.mxu0 0.0
    %785 = vmatpush1.msra.mxu0 0.0
    %786 = vmatprep.subr.mxu0 0.0
    %787 = vmatpush1.msra.mxu0 0.0
    %788 = vmatprep.subr.mxu0 0.0
    %789 = vmatpush1.msra.mxu0 0.0
    %790 = vmatprep.subr.mxu0 0.0
    %791 = vmatpush1.msra.mxu0 0.0
    %792 = vmatprep.subr.mxu0 0.0
    %793 = vmatpush1.msra.mxu0 0.0
    %794 = vmatprep.subr.mxu0 0.0
    %795 = vmatpush1.msra.mxu0 0.0
    %796 = vmatprep.subr.mxu0 0.0
    %797 = vmatpush1.msra.mxu0 0.0
    %798 = vmatprep.subr.mxu0 0.0
    %799 = vmatpush1.msra.mxu0 0.0
    %800 = vmatprep.subr.mxu0 0.0
    %801 = vmatpush1.msra.mxu0 0.0
    %802 = vmatprep.mubr.f32.mxu0 0.0
    %803 = vmatmul.mubr.f32.gmra.mrb[0].mxu0 %v736
    %v804 = vpop.f32.mrb[0].mxu0
    %v805 = vadd.f32 0.0, %v804
    %v806 = vpop.f32.mrb[0].mxu0
    %807 = vdwg.mxu0
    %v808 = vadd.f32 %v732, %v805
    %v809 = vmul.f32 %v808, %v58
    %v810 = vxor.u32 %v809, 2147483648
    %v811 = vmul.f32 %v810, 1.442695
    %v812 = vpow.pop %v811
    %v813 = vadd.f32 %v812, 1.0
    %v814 = vrcp.pop %v813
    %v815 = vmul.f32 1.0, %v814
    %v816 = vmul.f32 %v815, %v58
    %v817 = vadd.f32 %v816, %v59
    %v818 = vmul.f32 %v817, %v720
    %820 = vrot.lane.b32.xlu0 %v817, 64
    %v821 = vpop.permute.xlu0 %820
    %v823 = vmul.f32 %v817, %v821
    %825 = vrot.lane.b32.xlu0 %v823, 32
    %v826 = vpop.permute.xlu0 %825
    %v828 = vadd.f32 %v818, %v826
    %v829 = vtanh.pop %v828
    %831 = vrot.lane.b32.xlu0 %v829, 64
    %v832 = vpop.permute.xlu0 %831
    %v834 = vmul.f32 %v817, %v832
    %835 = vset.pattern.permute.xlu0 7
    %836 = vperm.xlu0 %835, %v62
    %v837 = vpop.permute.xlu0 %836
    %v839 = vmul.f32 %v837, %v72
    %v840 = vadd.f32 %v839, %v79
    %842 = vrot.lane.b32.xlu0 %v834, 32
    %v843 = vpop.permute.xlu0 %842
    %v844 = vsel %vm82, %v843, 0
    %846 = vmatprep.subr.mxu0 0.0
    %847 = vmatpush1.msra.mxu0 %v48
    %848 = vmatprep.subr.mxu0 0.0
    %849 = vmatpush1.msra.mxu0 %v49
    %850 = vmatprep.subr.mxu0 0.0
    %851 = vmatpush1.msra.mxu0 %v50
    %852 = vmatprep.subr.mxu0 0.0
    %853 = vmatpush1.msra.mxu0 %v51
    %854 = vmatprep.subr.mxu0 0.0
    %855 = vmatpush1.msra.mxu0 0.0
    %856 = vmatprep.subr.mxu0 0.0
    %857 = vmatpush1.msra.mxu0 0.0
    %858 = vmatprep.subr.mxu0 0.0
    %859 = vmatpush1.msra.mxu0 0.0
    %860 = vmatprep.subr.mxu0 0.0
    %861 = vmatpush1.msra.mxu0 0.0
    %862 = vmatprep.subr.mxu0 0.0
    %863 = vmatpush1.msra.mxu0 0.0
    %864 = vmatprep.subr.mxu0 0.0
    %865 = vmatpush1.msra.mxu0 0.0
    %866 = vmatprep.subr.mxu0 0.0
    %867 = vmatpush1.msra.mxu0 0.0
    %868 = vmatprep.subr.mxu0 0.0
    %869 = vmatpush1.msra.mxu0 0.0
    %870 = vmatprep.subr.mxu0 0.0
    %871 = vmatpush1.msra.mxu0 0.0
    %872 = vmatprep.subr.mxu0 0.0
    %873 = vmatpush1.msra.mxu0 0.0
    %874 = vmatprep.subr.mxu0 0.0
    %875 = vmatpush1.msra.mxu0 0.0
    %876 = vmatprep.subr.mxu0 0.0
    %877 = vmatpush1.msra.mxu0 0.0
    %878 = vmatprep.subr.mxu0 0.0
    %879 = vmatpush1.msra.mxu0 0.0
    %880 = vmatprep.subr.mxu0 0.0
    %881 = vmatpush1.msra.mxu0 0.0
    %882 = vmatprep.subr.mxu0 0.0
    %883 = vmatpush1.msra.mxu0 0.0
    %884 = vmatprep.subr.mxu0 0.0
    %885 = vmatpush1.msra.mxu0 0.0
    %886 = vmatprep.subr.mxu0 0.0
    %887 = vmatpush1.msra.mxu0 0.0
    %888 = vmatprep.subr.mxu0 0.0
    %889 = vmatpush1.msra.mxu0 0.0
    %890 = vmatprep.subr.mxu0 0.0
    %891 = vmatpush1.msra.mxu0 0.0
    %892 = vmatprep.subr.mxu0 0.0
    %893 = vmatpush1.msra.mxu0 0.0
    %894 = vmatprep.subr.mxu0 0.0
    %895 = vmatpush1.msra.mxu0 0.0
    %896 = vmatprep.subr.mxu0 0.0
    %897 = vmatpush1.msra.mxu0 0.0
    %898 = vmatprep.subr.mxu0 0.0
    %899 = vmatpush1.msra.mxu0 0.0
    %900 = vmatprep.subr.mxu0 0.0
    %901 = vmatpush1.msra.mxu0 0.0
    %902 = vmatprep.subr.mxu0 0.0
    %903 = vmatpush1.msra.mxu0 0.0
    %904 = vmatprep.subr.mxu0 0.0
    %905 = vmatpush1.msra.mxu0 0.0
    %906 = vmatprep.subr.mxu0 0.0
    %907 = vmatpush1.msra.mxu0 0.0
    %908 = vmatprep.subr.mxu0 0.0
    %909 = vmatpush1.msra.mxu0 0.0
    %910 = vmatprep.mubr.f32.mxu0 0.0
    %911 = vmatmul.mubr.f32.gmra.mrb[0].mxu0 %v844
    %v912 = vpop.f32.mrb[0].mxu0
    %v913 = vadd.f32 0.0, %v912
    %v914 = vpop.f32.mrb[0].mxu0
    %915 = vdwg.mxu0
    %v916 = vadd.f32 %v840, %v913
    %v917 = vmul.f32 %v916, %v58
    %v918 = vxor.u32 %v917, 2147483648
    %v919 = vmul.f32 %v918, 1.442695
    %v920 = vpow.pop %v919
    %v921 = vadd.f32 %v920, 1.0
    %v922 = vrcp.pop %v921
    %v923 = vmul.f32 1.0, %v922
    %v924 = vmul.f32 %v923, %v58
    %v925 = vadd.f32 %v924, %v59
    %v926 = vmul.f32 %v925, %v828
    %928 = vrot.lane.b32.xlu0 %v925, 64
    %v929 = vpop.permute.xlu0 %928
    %v931 = vmul.f32 %v925, %v929
    %933 = vrot.lane.b32.xlu0 %v931, 32
    %v934 = vpop.permute.xlu0 %933
    %v936 = vadd.f32 %v926, %v934
    %v937 = vtanh.pop %v936
    %939 = vrot.lane.b32.xlu0 %v937, 64
    %v940 = vpop.permute.xlu0 %939
    %v942 = vmul.f32 %v925, %v940
    %944 = vrot.lane.b32.xlu0 %v942, 32
    %v945 = vpop.permute.xlu0 %944
    %vm947 = vcmask 254976
    %948 = vst.msk [vmem:[#allocation2] sm:$0x3] %vm947, %v945
    %950 = vrot.lane.b32.xlu0 %v936, 96
    %v951 = vpop.permute.xlu0 %950
    %953 = vst.msk [vmem:[#allocation3] sm:$0x3] %vm947, %v951
    // Predicated region
    $region34: #{tpu_custom_call.1} parent=1 // pred_check
      %p954 = pneg %p40
    $region35: #{tpu_custom_call.1} parent=1 // pred_check_branch
      %956 = sbr.rel (%p954) target = $region37
    $region36: #{tpu_custom_call.1} parent=1 // pred_region
      %v957 = vld [vmem:[#allocation2] sm:$0x3]
      %v958 = vld [vmem:[%s4] sm:$0x1]
      %v960 = vlaneseq
      %v961 = vshrl.u32 %v960, 7
      %v962 = vsub.s32 0, %v961
      %v963 = vrot.slane %v958, %v962
      %v965 = vmul.f32 %v957, %v963
      %v966 = vsel %vm947, %v965, 0.0
      %967 = vadd.xlane.f32.xlu0 %v966
      %v968 = vpop.xlane.xlu0 %967
      %v969 = vld [vmem:[#allocation4] sm:$0x1]
      %v971 = vlaneseq
      %v972 = vshrl.u32 %v971, 7
      %v973 = vsub.s32 0, %v972
      %v974 = vrot.slane %v969, %v973
      %v976 = vadd.f32 %v968, %v974
      %978 = vset.pattern.permute.xlu0 0
      %979 = vperm.xlu0 %978, %v976
      %v980 = vpop.permute.xlu0 %979
      %v981 = vlaneseq
      %v982 = vshrl.u32 %v981, 7
      %v983 = vsub.s32 %v54, %v982
      %v984 = vrot.slane %v980, %v983
      %vm986 = vcmask 8192
      %987 = vst.msk [vmem:[#allocation8] sm:$0x1] %vm986, %v984
    $region37: #{tpu_custom_call.1} parent=1 // pred_fallthru
      _
    // Predicated region
    $region38: #{tpu_custom_call.1} parent=1 // pred_check
      _
    $region39: #{tpu_custom_call.1} parent=1 // pred_check_branch
      %989 = sbr.rel (0) target = $region41
    $region40: #{tpu_custom_call.1} parent=1 // pred_region
      %s991 = ssub.s32 16, 16
      %992 = vsyncadd [#allocation7], %s991
      %s994 = sshll.u32 [#allocation8], 4
      %s995 = int_to_ptr.vmem [resolvable:$true] %s994
      %997 = dma.vmem_to_hbm [thread:$0]  %s995, 16, %s6, [#allocation7]
    $region41: #{tpu_custom_call.1} parent=1 // pred_fallthru
      _
    // Predicated region
    $region42: #{tpu_custom_call.1} parent=1 // pred_check
      _
    $region43: #{tpu_custom_call.1} parent=1 // pred_check_branch
      %999 = sbr.rel (0) target = $region45
    $region44: #{tpu_custom_call.1} parent=1 // pred_region
      %1000 = dma.done [#allocation7], 16
    $region45: #{tpu_custom_call.1} parent=1 // pred_fallthru
      _
    %1001 = vsyncpa [#allocation6], 1
    %1002 = vsyncpa [#allocation7], 1

</llo_original>
